<compile_context>
chip_gen: v5e
topology: v5e:2x2
jax: 0.10.0
libtpu: 0.0.40
codegen_flags: <defaults>
</compile_context>

<pallas_src>
import jax
import jax.numpy as jnp
from jax.experimental import pallas as pl
from jax.experimental.pallas import tpu as pltpu


def _choose_pack(seq_len, dim):
    """Positions packed per output row so the last axis is lane-dense."""
    if dim >= 128:
        return 1
    k = max(1, 512 // dim)
    while k > 1 and seq_len % k != 0:
        k //= 2
    return k


def _choose_tile_rows(rows, width, out_itemsize):
    """Rows per block: 2 outs x 2 bufs + 2 f32 delta ins x 2 bufs <= ~8 MiB."""
    bytes_per_row = width * (4 * out_itemsize + 16)
    budget = 8 * 1024 * 1024
    ts = max(8, budget // max(bytes_per_row, 1))
    ts = min(ts, 2048, rows)
    if ts < rows:
        ts = max(8, (ts // 8) * 8)
    return ts


def _rope_cache_kernel(kw_ref, phase_ref, cosd_ref, sind_ref, cos_ref, sin_ref):
    """kw_ref/phase_ref: (1, width) f32.  cosd/sind: (ts, width) f32 (tile-
    invariant).  cos_ref/sin_ref: (ts, width) tiles of the caches (out dtype).

    angle[r, l] = (row0 + r) * k * w[l] + phase[l]
                = base[l] + delta[r, l],   delta precomputed outside.
    """
    ts = cos_ref.shape[0]
    row0 = (pl.program_id(0) * ts).astype(jnp.float32)
    base = row0 * kw_ref[...] + phase_ref[...]          # (1, width), f32
    cb = jnp.cos(base)                                  # tiny per-tile EUP/VALU work
    sb = jnp.sin(base)
    cd = cosd_ref[...]
    sd = sind_ref[...]
    # cos(base + delta), sin(base + delta) via angle addition: 4 mul + 2 add.
    cos_ref[...] = (cb * cd - sb * sd).astype(cos_ref.dtype)
    sin_ref[...] = (sb * cd + cb * sd).astype(sin_ref.dtype)


def rope_cache_pallas(inv_freq_half, pos_scale, seq_len, out_dtype):
    """Build cos/sin caches of shape [seq_len, dim] with one Pallas call.

    inv_freq_half: [dim//2] f32 (1 / base^(2i/dim)).
    pos_scale:     factor applied to positions (1/scale init path, scale on the
                   recompute path, faithful to the PyTorch module).
    """
    out_dtype = jnp.dtype(out_dtype)
    dim = 2 * int(inv_freq_half.shape[0])

    k = _choose_pack(seq_len, dim)
    width = k * dim
    rows = seq_len // k

    # Duplicated-half frequency row with the position scale folded in.
    w = (jnp.concatenate([inv_freq_half, inv_freq_half]).astype(jnp.float32)
         * jnp.float32(pos_scale))                                    # [dim]
    w_tiled = jnp.tile(w, (k,))                                       # [width]
    sub = jnp.repeat(jnp.arange(k, dtype=jnp.float32), dim)           # lane//dim
    phase = (sub * w_tiled).reshape(1, width)                         # (l//dim)*w
    kw = (jnp.float32(k) * w_tiled).reshape(1, width)                 # k*w

    ts = _choose_tile_rows(rows, width, out_dtype.itemsize)

    # Tile-invariant delta = r*k*w and its cos/sin, computed once on host side.
    r = jnp.arange(ts, dtype=jnp.float32).reshape(ts, 1)
    delta = r * kw                                                    # (ts, width)
    cosd = jnp.cos(delta)
    sind = jnp.sin(delta)

    grid = (pl.cdiv(rows, ts),)

    cos2d, sin2d = pl.pallas_call(
        _rope_cache_kernel,
        out_shape=(
            jax.ShapeDtypeStruct((rows, width), out_dtype),
            jax.ShapeDtypeStruct((rows, width), out_dtype),
        ),
        grid=grid,
        in_specs=[
            pl.BlockSpec((1, width), lambda i: (0, 0)),
            pl.BlockSpec((1, width), lambda i: (0, 0)),
            pl.BlockSpec((ts, width), lambda i: (0, 0)),
            pl.BlockSpec((ts, width), lambda i: (0, 0)),
        ],
        out_specs=(
            pl.BlockSpec((ts, width), lambda i: (i, 0)),
            pl.BlockSpec((ts, width), lambda i: (i, 0)),
        ),
        compiler_params=pltpu.CompilerParams(
            dimension_semantics=("parallel",),
        ),
    )(kw, phase, cosd, sind)

    # Row-major unpack of the k positions per row; pure reshape, no pad/slice.
    return cos2d.reshape(seq_len, dim), sin2d.reshape(seq_len, dim)


class ScaledRotaryEmbedding:
    """JAX/Pallas port of the PyTorch ScaledRotaryEmbedding (scale=4)."""

    def __init__(self, dim, max_position_embeddings=2048, base=10000):
        self.dim = dim
        self.base = float(base)
        self.scale = 4
        self.max_seq_len_cached = max_position_embeddings * self.scale
        self.inv_freq = 1.0 / (
            self.base ** (jnp.arange(0, dim, 2, dtype=jnp.float32) / dim)
        )
        # Init path of the reference builds the cache with t /= scale.
        self._pos_scale = 1.0 / self.scale
        # dtype -> (cos [1,1,L,dim], sin [1,1,L,dim]); cleared on recompute.
        self._caches = {}

    def _get_cache(self, dtype):
        key = jnp.dtype(dtype)
        if key not in self._caches:
            length = self.max_seq_len_cached
            cos2d, sin2d = rope_cache_pallas(
                self.inv_freq, self._pos_scale, length, key
            )
            self._caches[key] = (
                cos2d.reshape(1, 1, length, self.dim),
                sin2d.reshape(1, 1, length, self.dim),
            )
        return self._caches[key]

    def __call__(self, x, seq_len=None):
        # NOTE: Python-side stateful cache (like register_buffer); intended for
        # eager use, cache-rebuild logic is not re-traced under jax.jit.
        if seq_len is None:
            seq_len = x.shape[-2]
        if seq_len > self.max_seq_len_cached:
            # Faithful to the PyTorch recompute branch, which uses t *= scale.
            self.max_seq_len_cached = seq_len
            self._pos_scale = float(self.scale)
            self._caches.clear()
        cos, sin = self._get_cache(x.dtype)
        return cos[:, :, :seq_len, :], sin[:, :, :seq_len, :]


def _reference_cos_sin(dim, cache_len, seq_len, dtype, base=10000.0,
                       pos_scale=0.25):
    """Pure-jnp reference matching the PyTorch module's cache build."""
    inv_freq = 1.0 / (base ** (jnp.arange(0, dim, 2, dtype=jnp.float32) / dim))
    t = jnp.arange(cache_len, dtype=jnp.float32) * jnp.float32(pos_scale)
    freqs = jnp.einsum("i,j->ij", t, inv_freq)
    emb = jnp.concatenate([freqs, freqs], axis=-1)
    cos = jnp.cos(emb)[None, None, :seq_len, :].astype(dtype)
    sin = jnp.sin(emb)[None, None, :seq_len, :].astype(dtype)
    return cos, sin


if __name__ == "__main__":
    dim = 64
    max_pos = 32          # cached length = 32 * 4 = 128
    seq_len = 8
    batch, heads = 2, 4

    key = jax.random.PRNGKey(0)
    x_f32 = jax.random.normal(key, (batch, heads, seq_len, dim), dtype=jnp.float32)

    rope = ScaledRotaryEmbedding(dim, max_position_embeddings=max_pos)

    # ---- f32 path (init cache: t / scale) ----
    cos, sin = rope(x_f32, seq_len=seq_len)
    cos, sin = jax.block_until_ready((cos, sin))
    cos_ref, sin_ref = _reference_cos_sin(dim, max_pos * 4, seq_len, jnp.float32,
                                          pos_scale=1.0 / 4.0)
    assert cos.shape == (1, 1, seq_len, dim) and sin.shape == (1, 1, seq_len, dim)
    assert jnp.allclose(cos, cos_ref, atol=1e-5), "cos mismatch (f32)"
    assert jnp.allclose(sin, sin_ref, atol=1e-5), "sin mismatch (f32)"

    # ---- bf16 path (dtype-keyed cache, cast happens at the kernel store) ----
    x_bf16 = x_f32.astype(jnp.bfloat16)
    cos_b, sin_b = rope(x_bf16, seq_len=seq_len)
    cos_b, sin_b = jax.block_until_ready((cos_b, sin_b))
    cos_rb, sin_rb = _reference_cos_sin(dim, max_pos * 4, seq_len, jnp.bfloat16,
                                        pos_scale=1.0 / 4.0)
    assert cos_b.dtype == jnp.bfloat16 and sin_b.dtype == jnp.bfloat16
    assert jnp.allclose(cos_b.astype(jnp.float32), cos_rb.astype(jnp.float32),
                        atol=1e-2), "cos mismatch (bf16)"
    assert jnp.allclose(sin_b.astype(jnp.float32), sin_rb.astype(jnp.float32),
                        atol=1e-2), "sin mismatch (bf16)"

    # ---- recompute branch (seq_len > cached): reference uses t * scale ----
    long_len = 130
    x_long = jnp.zeros((1, 1, long_len, dim), dtype=jnp.float32)
    cos_l, sin_l = rope(x_long, seq_len=long_len)
    cos_l, sin_l = jax.block_until_ready((cos_l, sin_l))
    cos_lr, sin_lr = _reference_cos_sin(dim, long_len, long_len, jnp.float32,
                                        pos_scale=4.0)
    assert cos_l.shape == (1, 1, long_len, dim)
    assert jnp.allclose(cos_l, cos_lr, atol=1e-3), "cos mismatch (recompute)"
    assert jnp.allclose(sin_l, sin_lr, atol=1e-3), "sin mismatch (recompute)"

    print("KERNEL_OK")
</pallas_src>

<mosaic_0001>
module attributes {stable_mosaic.version = 11 : i64} {
  func.func @_rope_cache_kernel(%arg0: i32, %arg1: memref<1x512xf32, #tpu.memory_space<vmem>>, %arg2: memref<1x512xf32, #tpu.memory_space<vmem>>, %arg3: memref<16x512xf32, #tpu.memory_space<vmem>>, %arg4: memref<16x512xf32, #tpu.memory_space<vmem>>, %arg5: memref<16x512xf32, #tpu.memory_space<vmem>>, %arg6: memref<16x512xf32, #tpu.memory_space<vmem>>) attributes {dimension_semantics = [#tpu.dimension_semantics<parallel>], iteration_bounds = array<i64: 1>, scalar_prefetch = 0 : i64, scratch_operands = 0 : i64, tpu.core_type = #tpu.core_type<tc>, window_params = [{pipeline_mode = #tpu.pipeline_mode<synchronous>, transform_indices = @transform_0, window_bounds = array<i64: 1, 512>}, {pipeline_mode = #tpu.pipeline_mode<synchronous>, transform_indices = @transform_1, window_bounds = array<i64: 1, 512>}, {pipeline_mode = #tpu.pipeline_mode<synchronous>, transform_indices = @transform_2, window_bounds = array<i64: 16, 512>}, {pipeline_mode = #tpu.pipeline_mode<synchronous>, transform_indices = @transform_3, window_bounds = array<i64: 16, 512>}, {transform_indices = @transform_4, window_bounds = array<i64: 16, 512>}, {transform_indices = @transform_5, window_bounds = array<i64: 16, 512>}]} {
    %c16_i32 = arith.constant 16 : i32
    %0 = arith.muli %arg0, %c16_i32 : i32
    %1 = arith.sitofp %0 : i32 to f32
    %c0 = arith.constant 0 : index
    %c0_0 = arith.constant 0 : index
    %2 = vector.load %arg1[%c0, %c0_0] : memref<1x512xf32, #tpu.memory_space<vmem>>, vector<1x512xf32>
    %3 = vector.broadcast %1 : f32 to vector<1x512xf32>
    %4 = arith.mulf %3, %2 : vector<1x512xf32>
    %c0_1 = arith.constant 0 : index
    %c0_2 = arith.constant 0 : index
    %5 = vector.load %arg2[%c0_1, %c0_2] : memref<1x512xf32, #tpu.memory_space<vmem>>, vector<1x512xf32>
    %6 = arith.addf %4, %5 : vector<1x512xf32>
    %7 = math.cos %6 : vector<1x512xf32>
    %8 = math.sin %6 : vector<1x512xf32>
    %c0_3 = arith.constant 0 : index
    %c0_4 = arith.constant 0 : index
    %9 = vector.load %arg3[%c0_3, %c0_4] : memref<16x512xf32, #tpu.memory_space<vmem>>, vector<16x512xf32>
    %c0_5 = arith.constant 0 : index
    %c0_6 = arith.constant 0 : index
    %10 = vector.load %arg4[%c0_5, %c0_6] : memref<16x512xf32, #tpu.memory_space<vmem>>, vector<16x512xf32>
    %11 = vector.broadcast %7 : vector<1x512xf32> to vector<16x512xf32>
    %12 = arith.mulf %11, %9 : vector<16x512xf32>
    %13 = vector.broadcast %8 : vector<1x512xf32> to vector<16x512xf32>
    %14 = arith.mulf %13, %10 : vector<16x512xf32>
    %15 = arith.subf %12, %14 : vector<16x512xf32>
    %c0_7 = arith.constant 0 : index
    %c0_8 = arith.constant 0 : index
    %16 = vector.load %arg5[%c0_7, %c0_8] : memref<16x512xf32, #tpu.memory_space<vmem>>, vector<16x512xf32>
    tpu.vector_store %arg5[%c0_7, %c0_8], %15 {strides = array<i32>} : memref<16x512xf32, #tpu.memory_space<vmem>>, vector<16x512xf32>,
    %17 = vector.broadcast %8 : vector<1x512xf32> to vector<16x512xf32>
    %18 = arith.mulf %17, %9 : vector<16x512xf32>
    %19 = vector.broadcast %7 : vector<1x512xf32> to vector<16x512xf32>
    %20 = arith.mulf %19, %10 : vector<16x512xf32>
    %21 = arith.addf %18, %20 : vector<16x512xf32>
    %c0_9 = arith.constant 0 : index
    %c0_10 = arith.constant 0 : index
    %22 = vector.load %arg6[%c0_9, %c0_10] : memref<16x512xf32, #tpu.memory_space<vmem>>, vector<16x512xf32>
    tpu.vector_store %arg6[%c0_9, %c0_10], %21 {strides = array<i32>} : memref<16x512xf32, #tpu.memory_space<vmem>>, vector<16x512xf32>,
    return
  }
  func.func @transform_0(%arg0: i32) -> (i32, i32) {
    %c0_i32 = arith.constant 0 : i32
    %c0_i32_0 = arith.constant 0 : i32
    %c0_i32_1 = arith.constant 0 : i32
    return %c0_i32, %c0_i32_0 : i32, i32
  }
  func.func @transform_1(%arg0: i32) -> (i32, i32) {
    %c0_i32 = arith.constant 0 : i32
    %c0_i32_0 = arith.constant 0 : i32
    %c0_i32_1 = arith.constant 0 : i32
    return %c0_i32, %c0_i32_0 : i32, i32
  }
  func.func @transform_2(%arg0: i32) -> (i32, i32) {
    %c0_i32 = arith.constant 0 : i32
    %c0_i32_0 = arith.constant 0 : i32
    %c0_i32_1 = arith.constant 0 : i32
    return %c0_i32, %c0_i32_0 : i32, i32
  }
  func.func @transform_3(%arg0: i32) -> (i32, i32) {
    %c0_i32 = arith.constant 0 : i32
    %c0_i32_0 = arith.constant 0 : i32
    %c0_i32_1 = arith.constant 0 : i32
    return %c0_i32, %c0_i32_0 : i32, i32
  }
  func.func @transform_4(%arg0: i32) -> (i32, i32) {
    %c0_i32 = arith.constant 0 : i32
    %c0_i32_0 = arith.constant 0 : i32
    return %arg0, %c0_i32 : i32, i32
  }
  func.func @transform_5(%arg0: i32) -> (i32, i32) {
    %c0_i32 = arith.constant 0 : i32
    %c0_i32_0 = arith.constant 0 : i32
    return %arg0, %c0_i32 : i32, i32
  }
}

</mosaic_0001>

<llo_original>
// kernel: tpu_custom_call.1
$region0: #{tpu_custom_call.1}
  #allocation0 [shape = 'u32[]', space=smem, size = 0x4, offset = 0x4, fixed_abs, tag = 'smem constant byte address 0x4 - core index']
  #allocation1 [shape = 'u32[72,128]{1,0:T(1,128)}', space=vmem, size = 0x9000, scoped, tag = 'internal scratch']
  %s0 = inlined_call_operand.hbm [shape: f32[1,512], index: 0, kind: input, shape index: {}]
  %s1 = inlined_call_operand.hbm [shape: f32[1,512], index: 1, kind: input, shape index: {}]
  %s2 = inlined_call_operand.hbm [shape: f32[16,512], index: 2, kind: input, shape index: {}]
  %s3 = inlined_call_operand.hbm [shape: f32[16,512], index: 3, kind: input, shape index: {}]
  %s4 = inlined_call_operand.hbm [shape: f32[16,512], index: 4, kind: output, shape index: {0}]
  %s5 = inlined_call_operand.hbm [shape: f32[16,512], index: 5, kind: output, shape index: {1}]
  %6 = xla_tuple %s4, %s5
  %s7 = sld [smem:[#allocation0]]
  $region50: #{tpu_custom_call.1} parent=0
    _
  %s9 = ssub.s32 1, %s7
  %s10 = scalar_select 0, %s9, %s7
  $region1: #{tpu_custom_call.1} parent=0
    #allocation2 [shape = 'u8[2048]{0}', space=vmem, size = 0x800, scoped, tag = 'input window, operand 0, single buffered']
    #allocation3 [shape = 's32[1]{0}', space=sflag, size = 0x4, scoped, tag = 'scoped memory for tpu_custom_call.1']
    #allocation4 [shape = 's32[1]{0}', space=sflag, size = 0x4, scoped, tag = 'scoped memory for tpu_custom_call.1']
    #allocation5 [shape = 'u8[2048]{0}', space=vmem, size = 0x800, scoped, tag = 'input window, operand 1, single buffered']
    #allocation6 [shape = 's32[1]{0}', space=sflag, size = 0x4, scoped, tag = 'scoped memory for tpu_custom_call.1']
    #allocation7 [shape = 'u8[32768]{0}', space=vmem, size = 0x8000, scoped, tag = 'input window, operand 2, single buffered']
    #allocation8 [shape = 'u8[32768]{0}', space=vmem, size = 0x8000, scoped, tag = 'input window, operand 3, single buffered']
    #allocation9 [shape = 's32[1]{0}', space=sflag, size = 0x4, scoped, tag = 'scoped memory for tpu_custom_call.1']
    #allocation10 [shape = 'u8[32768]{0}', space=vmem, size = 0x8000, scoped, tag = 'output window, operand 0, single buffered']
    #allocation11 [shape = 'u8[32768]{0}', space=vmem, size = 0x8000, scoped, tag = 'output window, operand 1, single buffered']
    #allocation12 [shape = 's32[1]{0}', space=sflag, size = 0x4, scoped, tag = 'scoped memory for tpu_custom_call.1']
    %11 = vsyncpa [#allocation3], 0
    %12 = vsyncpa [#allocation6], 0
    %13 = vsyncpa [#allocation9], 0
    %14 = vsyncpa [#allocation4], 0
    %15 = vsyncpa [#allocation12], 0
    // Predicated region
    $region2: #{tpu_custom_call.1} parent=1 // pred_check
      _
    $region3: #{tpu_custom_call.1} parent=1 // pred_check_branch
      %17 = sbr.rel (0) target = $region5
    $region4: #{tpu_custom_call.1} parent=1 // pred_region
      %19 = vsyncadd [#allocation3], 0
      %s21 = sshll.u32 %s0, 4
      %s22 = int_to_ptr.hbm [resolvable:$true] %s21
      %s23 = sshll.u32 [#allocation2], 4
      %s24 = int_to_ptr.vmem [resolvable:$true] %s23
      %26 = dma.hbm_to_vmem [thread:$0]  %s22, 64, %s24, [#allocation3]
    $region5: #{tpu_custom_call.1} parent=1 // pred_fallthru
      _
    // Predicated region
    $region6: #{tpu_custom_call.1} parent=1 // pred_check
      _
    $region7: #{tpu_custom_call.1} parent=1 // pred_check_branch
      %28 = sbr.rel (0) target = $region9
    $region8: #{tpu_custom_call.1} parent=1 // pred_region
      %30 = vsyncadd [#allocation6], 0
      %s32 = sshll.u32 %s1, 4
      %s33 = int_to_ptr.hbm [resolvable:$true] %s32
      %s34 = sshll.u32 [#allocation5], 4
      %s35 = int_to_ptr.vmem [resolvable:$true] %s34
      %37 = dma.hbm_to_vmem [thread:$0]  %s33, 64, %s35, [#allocation6]
    $region9: #{tpu_custom_call.1} parent=1 // pred_fallthru
      _
    // Predicated region
    $region10: #{tpu_custom_call.1} parent=1 // pred_check
      _
    $region11: #{tpu_custom_call.1} parent=1 // pred_check_branch
      %39 = sbr.rel (0) target = $region13
    $region12: #{tpu_custom_call.1} parent=1 // pred_region
      %41 = vsyncadd [#allocation6], 0
      %s42 = sshll.u32 %s2, 4
      %s43 = int_to_ptr.hbm [resolvable:$true] %s42
      %s44 = sshll.u32 [#allocation7], 4
      %s45 = int_to_ptr.vmem [resolvable:$true] %s44
      %50 = dma.hbm_to_vmem [thread:$0]  %s43, 1024, %s45, [#allocation6], 512, 512, 32
    $region13: #{tpu_custom_call.1} parent=1 // pred_fallthru
      _
    // Predicated region
    $region14: #{tpu_custom_call.1} parent=1 // pred_check
      _
    $region15: #{tpu_custom_call.1} parent=1 // pred_check_branch
      %52 = sbr.rel (0) target = $region17
    $region16: #{tpu_custom_call.1} parent=1 // pred_region
      %54 = vsyncadd [#allocation9], 0
      %s55 = sshll.u32 %s3, 4
      %s56 = int_to_ptr.hbm [resolvable:$true] %s55
      %s57 = sshll.u32 [#allocation8], 4
      %s58 = int_to_ptr.vmem [resolvable:$true] %s57
      %63 = dma.hbm_to_vmem [thread:$0]  %s56, 1024, %s58, [#allocation9], 512, 512, 32
    $region17: #{tpu_custom_call.1} parent=1 // pred_fallthru
      _
    // Predicated region
    $region18: #{tpu_custom_call.1} parent=1 // pred_check
      _
    $region19: #{tpu_custom_call.1} parent=1 // pred_check_branch
      %65 = sbr.rel (0) target = $region21
    $region20: #{tpu_custom_call.1} parent=1 // pred_region
      %67 = dma.done [#allocation3], 64
    $region21: #{tpu_custom_call.1} parent=1 // pred_fallthru
      _
    // Predicated region
    $region22: #{tpu_custom_call.1} parent=1 // pred_check
      _
    $region23: #{tpu_custom_call.1} parent=1 // pred_check_branch
      %69 = sbr.rel (0) target = $region25
    $region24: #{tpu_custom_call.1} parent=1 // pred_region
      %71 = dma.done [#allocation6], 64
    $region25: #{tpu_custom_call.1} parent=1 // pred_fallthru
      _
    // Predicated region
    $region26: #{tpu_custom_call.1} parent=1 // pred_check
      _
    $region27: #{tpu_custom_call.1} parent=1 // pred_check_branch
      %73 = sbr.rel (0) target = $region29
    $region28: #{tpu_custom_call.1} parent=1 // pred_region
      %75 = dma.done [#allocation6], 1024
    $region29: #{tpu_custom_call.1} parent=1 // pred_fallthru
      _
    // Predicated region
    $region30: #{tpu_custom_call.1} parent=1 // pred_check
      _
    $region31: #{tpu_custom_call.1} parent=1 // pred_check_branch
      %77 = sbr.rel (0) target = $region33
    $region32: #{tpu_custom_call.1} parent=1 // pred_region
      %79 = dma.done [#allocation9], 1024
    $region33: #{tpu_custom_call.1} parent=1 // pred_fallthru
      _
    %s80 = smul.u32 0, 16
    %s81 = scvt.s32.f32 %s80
    %v82 = vld [vmem:[#allocation2] sm:$0xf]
    %v83 = vstv %s81
    %v84 = vmul.f32 %v83, %v82
    %v85 = vld [vmem:[#allocation5] sm:$0xf]
    %v86 = vadd.f32 %v84, %v85
    %v87 = vand.u32 2147483647, %v86
    %vm88 = vcmp.le.f32.partialorder %v87, 0.7853982
    %vm89 = vcmp.lt.s32.totalorder %v86, 0
    %v90 = vand.u32 %v86, 2139095040
    %v91 = vshrl.u32 %v90, 23
    %v92 = vsub.s32 %v91, 127
    %v93 = vand.u32 2147483647, %v86
    %v94 = vand.u32 %v93, 8388607
    %v95 = vor.u32 %v94, 8388608
    %v96 = vsub.s32 0, %v95
    %v97 = vadd.s32 %v92, 1
    %vm98 = vcmp.gt.s32.totalorder %v97, 0
    %v99 = vsel %vm98, %v97, 0
    %v100 = vshrl.u32 %v99, 5
    %v101 = vand.u32 %v99, 31
    %v102 = vsub.s32 32, %v101
    %v103 = vshrl.u32 683565275, %v102
    %v104 = vshll.u32 683565275, %v101
    %v105 = vshrl.u32 2475754826, %v102
    %v106 = vor.u32 %v104, %v105
    %v107 = vshll.u32 2475754826, %v101
    %v108 = vshrl.u32 2131351028, %v102
    %v109 = vor.u32 %v107, %v108
    %v110 = vshll.u32 2131351028, %v101
    %v111 = vshrl.u32 2102212464, %v102
    %v112 = vor.u32 %v110, %v111
    %v113 = vshll.u32 2102212464, %v101
    %v114 = vshrl.u32 920167782, %v102
    %v115 = vor.u32 %v113, %v114
    %v116 = vshll.u32 920167782, %v101
    %v117 = vshrl.u32 1326507024, %v102
    %v118 = vor.u32 %v116, %v117
    %vm119 = vcmp.lt.s32.totalorder %v100, 1
    %vm120 = vcmp.lt.s32.totalorder %v100, 2
    %vm121 = vcmp.lt.s32.totalorder %v100, 3
    %vm122 = vcmp.lt.s32.totalorder %v100, 4
    %v123 = vsel %vm119, %v103, %v106
    %v124 = vsel %vm122, %v112, 2102212464
    %v125 = vsel %vm121, %v109, %v124
    %v126 = vsel %vm120, %v123, %v125
    %v127 = vsel %vm119, %v106, %v109
    %v128 = vsel %vm122, %v115, 920167782
    %v129 = vsel %vm121, %v112, %v128
    %v130 = vsel %vm120, %v127, %v129
    %v131 = vsel %vm119, %v109, %v112
    %v132 = vsel %vm122, %v118, 1326507024
    %v133 = vsel %vm121, %v115, %v132
    %v134 = vsel %vm120, %v131, %v133
    %v135 = vshll.u32 %v95, 8
    %v136 = vand.u32 %v135, 65535
    %v137 = vshrl.u32 %v135, 16
    %v138 = vand.u32 %v134, 65535
    %v139 = vshrl.u32 %v134, 16
    %v140 = vmul.u32 %v136, %v138
    %v141 = vmul.u32 %v136, %v139
    %v142 = vmul.u32 %v137, %v138
    %v143 = vmul.u32 %v137, %v139
    %v144 = vshll.u32 %v141, 16
    %v145 = vshrl.u32 %v141, 16
    %v146 = vshll.u32 %v142, 16
    %v147 = vshrl.u32 %v142, 16
    %vm148 = vc.u32 %v140, %v144
    %v149 = vsel %vm148, 1, 0
    %v150 = vadd.s32 %v140, %v144
    %v151 = vadd.s32 %v143, %v149
    %vm152 = vc.u32 %v150, %v146
    %v153 = vsel %vm152, 1, 0
    %v154 = vadd.s32 %v150, %v146
    %v155 = vadd.s32 %v151, %v153
    %v156 = vadd.s32 %v155, %v145
    %v157 = vadd.s32 %v156, %v147
    %v158 = vand.u32 %v135, 65535
    %v159 = vshrl.u32 %v135, 16
    %v160 = vand.u32 %v130, 65535
    %v161 = vshrl.u32 %v130, 16
    %v162 = vmul.u32 %v158, %v160
    %v163 = vmul.u32 %v158, %v161
    %v164 = vmul.u32 %v159, %v160
    %v165 = vmul.u32 %v159, %v161
    %v166 = vshll.u32 %v163, 16
    %v167 = vshrl.u32 %v163, 16
    %v168 = vshll.u32 %v164, 16
    %v169 = vshrl.u32 %v164, 16
    %vm170 = vc.u32 %v162, %v166
    %v171 = vsel %vm170, 1, 0
    %v172 = vadd.s32 %v162, %v166
    %v173 = vadd.s32 %v165, %v171
    %vm174 = vc.u32 %v172, %v168
    %v175 = vsel %vm174, 1, 0
    %v176 = vadd.s32 %v172, %v168
    %v177 = vadd.s32 %v173, %v175
    %v178 = vadd.s32 %v177, %v167
    %v179 = vadd.s32 %v178, %v169
    %v180 = vmul.u32 %v135, %v126
    %v181 = vadd.s32 %v157, %v176
    %vm182 = vc.u32 %v157, %v176
    %v183 = vadd.s32 %v179, 1
    %v184 = vsel %vm182, %v183, %v179
    %v185 = vadd.s32 %v180, %v184
    %v186 = vadd.s32 %v185, 536870912
    %v187 = vshrl.u32 %v186, 30
    %v188 = vshll.u32 %v187, 30
    %v189 = vsub.s32 %v185, %v188
    %vm190 = vcmp.lt.s32.totalorder %v189, 0
    %v191 = vsub.s32 0, %v189
    %v192 = vsel %vm190, %v191, %v189
    %v193 = vclz %v192
    %v194 = vsub.s32 %v193, 2
    %vm195 = vcmp.gt.s32.totalorder 0, %v194
    %v196 = vsel %vm195, 0, %v194
    %v197 = vsub.s32 32, %v196
    %v198 = vshll.u32 %v189, %v196
    %v199 = vshrl.u32 %v181, %v197
    %v200 = vor.u32 %v198, %v199
    %v201 = vsub.s32 4294967266, %v196
    %v202 = vadd.s32 %v201, 127
    %v203 = vshll.u32 %v202, 23
    %v204 = vor.u32 4788187, %v203
    %v205 = vand.u32 2147483647, %v204
    %v207 = vcvt.s32.f32 %v200
    %v208 = vmul.f32 %v207, %v205
    %v209 = vxor.u32 %v208, 2147483648
    %v210 = vsel %vm89, %v209, %v208
    %v211 = vsub.s32 4, %v187
    %v212 = vsel %vm89, %v211, %v187
    %v213 = vsel %vm88, %v86, %v210
    %v214 = vsel %vm88, 0, %v212
    %v215 = vmul.f32 %v213, %v213
    %v216 = vmul.f32 %v215, -0.001358992
    %v217 = vadd.f32 %v216, 0.041655596
    %v218 = vmul.f32 %v215, %v217
    %v219 = vadd.f32 %v218, -0.4999988
    %v220 = vmul.f32 %v215, %v219
    %v221 = vadd.f32 1.0, %v220
    %v222 = vmul.f32 %v213, %v213
    %v223 = vmul.f32 %v222, -0.00019511016
    %v224 = vadd.f32 %v223, 0.008332121
    %v225 = vmul.f32 %v222, %v224
    %v226 = vadd.f32 %v225, -0.16666654
    %v227 = vmul.f32 %v222, %v226
    %v228 = vadd.f32 %v227, 1.0
    %v229 = vmul.f32 %v228, %v213
    %vm230 = vweird.f32 %v86
    %v231 = vand.u32 %v214, 3
    %vm232 = vcmp.lt.s32.totalorder %v231, 2
    %vm233 = vcmp.eq.s32.totalorder %v231, 0
    %v234 = vxor.u32 %v229, 2147483648
    %v235 = vsel %vm233, %v221, %v234
    %vm236 = vcmp.eq.s32.totalorder %v231, 2
    %v237 = vxor.u32 %v221, 2147483648
    %v238 = vsel %vm236, %v237, %v229
    %v239 = vsel %vm232, %v235, %v238
    %v240 = vsel %vm230, nan, %v239
    %v241 = vand.u32 2147483647, %v86
    %vm242 = vcmp.le.f32.partialorder %v241, 0.7853982
    %vm243 = vcmp.lt.s32.totalorder %v86, 0
    %v244 = vand.u32 %v86, 2139095040
    %v245 = vshrl.u32 %v244, 23
    %v246 = vsub.s32 %v245, 127
    %v247 = vand.u32 2147483647, %v86
    %v248 = vand.u32 %v247, 8388607
    %v249 = vor.u32 %v248, 8388608
    %v250 = vsub.s32 0, %v249
    %v251 = vadd.s32 %v246, 1
    %vm252 = vcmp.gt.s32.totalorder %v251, 0
    %v253 = vsel %vm252, %v251, 0
    %v254 = vshrl.u32 %v253, 5
    %v255 = vand.u32 %v253, 31
    %v256 = vsub.s32 32, %v255
    %v257 = vshrl.u32 683565275, %v256
    %v258 = vshll.u32 683565275, %v255
    %v259 = vshrl.u32 2475754826, %v256
    %v260 = vor.u32 %v258, %v259
    %v261 = vshll.u32 2475754826, %v255
    %v262 = vshrl.u32 2131351028, %v256
    %v263 = vor.u32 %v261, %v262
    %v264 = vshll.u32 2131351028, %v255
    %v265 = vshrl.u32 2102212464, %v256
    %v266 = vor.u32 %v264, %v265
    %v267 = vshll.u32 2102212464, %v255
    %v268 = vshrl.u32 920167782, %v256
    %v269 = vor.u32 %v267, %v268
    %v270 = vshll.u32 920167782, %v255
    %v271 = vshrl.u32 1326507024, %v256
    %v272 = vor.u32 %v270, %v271
    %vm273 = vcmp.lt.s32.totalorder %v254, 1
    %vm274 = vcmp.lt.s32.totalorder %v254, 2
    %vm275 = vcmp.lt.s32.totalorder %v254, 3
    %vm276 = vcmp.lt.s32.totalorder %v254, 4
    %v277 = vsel %vm273, %v257, %v260
    %v278 = vsel %vm276, %v266, 2102212464
    %v279 = vsel %vm275, %v263, %v278
    %v280 = vsel %vm274, %v277, %v279
    %v281 = vsel %vm273, %v260, %v263
    %v282 = vsel %vm276, %v269, 920167782
    %v283 = vsel %vm275, %v266, %v282
    %v284 = vsel %vm274, %v281, %v283
    %v285 = vsel %vm273, %v263, %v266
    %v286 = vsel %vm276, %v272, 1326507024
    %v287 = vsel %vm275, %v269, %v286
    %v288 = vsel %vm274, %v285, %v287
    %v289 = vshll.u32 %v249, 8
    %v290 = vand.u32 %v289, 65535
    %v291 = vshrl.u32 %v289, 16
    %v292 = vand.u32 %v288, 65535
    %v293 = vshrl.u32 %v288, 16
    %v294 = vmul.u32 %v290, %v292
    %v295 = vmul.u32 %v290, %v293
    %v296 = vmul.u32 %v291, %v292
    %v297 = vmul.u32 %v291, %v293
    %v298 = vshll.u32 %v295, 16
    %v299 = vshrl.u32 %v295, 16
    %v300 = vshll.u32 %v296, 16
    %v301 = vshrl.u32 %v296, 16
    %vm302 = vc.u32 %v294, %v298
    %v303 = vsel %vm302, 1, 0
    %v304 = vadd.s32 %v294, %v298
    %v305 = vadd.s32 %v297, %v303
    %vm306 = vc.u32 %v304, %v300
    %v307 = vsel %vm306, 1, 0
    %v308 = vadd.s32 %v304, %v300
    %v309 = vadd.s32 %v305, %v307
    %v310 = vadd.s32 %v309, %v299
    %v311 = vadd.s32 %v310, %v301
    %v312 = vand.u32 %v289, 65535
    %v313 = vshrl.u32 %v289, 16
    %v314 = vand.u32 %v284, 65535
    %v315 = vshrl.u32 %v284, 16
    %v316 = vmul.u32 %v312, %v314
    %v317 = vmul.u32 %v312, %v315
    %v318 = vmul.u32 %v313, %v314
    %v319 = vmul.u32 %v313, %v315
    %v320 = vshll.u32 %v317, 16
    %v321 = vshrl.u32 %v317, 16
    %v322 = vshll.u32 %v318, 16
    %v323 = vshrl.u32 %v318, 16
    %vm324 = vc.u32 %v316, %v320
    %v325 = vsel %vm324, 1, 0
    %v326 = vadd.s32 %v316, %v320
    %v327 = vadd.s32 %v319, %v325
    %vm328 = vc.u32 %v326, %v322
    %v329 = vsel %vm328, 1, 0
    %v330 = vadd.s32 %v326, %v322
    %v331 = vadd.s32 %v327, %v329
    %v332 = vadd.s32 %v331, %v321
    %v333 = vadd.s32 %v332, %v323
    %v334 = vmul.u32 %v289, %v280
    %v335 = vadd.s32 %v311, %v330
    %vm336 = vc.u32 %v311, %v330
    %v337 = vadd.s32 %v333, 1
    %v338 = vsel %vm336, %v337, %v333
    %v339 = vadd.s32 %v334, %v338
    %v340 = vadd.s32 %v339, 536870912
    %v341 = vshrl.u32 %v340, 30
    %v342 = vshll.u32 %v341, 30
    %v343 = vsub.s32 %v339, %v342
    %vm344 = vcmp.lt.s32.totalorder %v343, 0
    %v345 = vsub.s32 0, %v343
    %v346 = vsel %vm344, %v345, %v343
    %v347 = vclz %v346
    %v348 = vsub.s32 %v347, 2
    %vm349 = vcmp.gt.s32.totalorder 0, %v348
    %v350 = vsel %vm349, 0, %v348
    %v351 = vsub.s32 32, %v350
    %v352 = vshll.u32 %v343, %v350
    %v353 = vshrl.u32 %v335, %v351
    %v354 = vor.u32 %v352, %v353
    %v355 = vsub.s32 4294967266, %v350
    %v356 = vadd.s32 %v355, 127
    %v357 = vshll.u32 %v356, 23
    %v358 = vor.u32 4788187, %v357
    %v359 = vand.u32 2147483647, %v358
    %v361 = vcvt.s32.f32 %v354
    %v362 = vmul.f32 %v361, %v359
    %v363 = vxor.u32 %v362, 2147483648
    %v364 = vsel %vm243, %v363, %v362
    %v365 = vsub.s32 4, %v341
    %v366 = vsel %vm243, %v365, %v341
    %v367 = vsel %vm242, %v86, %v364
    %v368 = vsel %vm242, 0, %v366
    %v369 = vmul.f32 %v367, %v367
    %v370 = vmul.f32 %v369, -0.001358992
    %v371 = vadd.f32 %v370, 0.041655596
    %v372 = vmul.f32 %v369, %v371
    %v373 = vadd.f32 %v372, -0.4999988
    %v374 = vmul.f32 %v369, %v373
    %v375 = vadd.f32 1.0, %v374
    %v376 = vmul.f32 %v367, %v367
    %v377 = vmul.f32 %v376, -0.00019511016
    %v378 = vadd.f32 %v377, 0.008332121
    %v379 = vmul.f32 %v376, %v378
    %v380 = vadd.f32 %v379, -0.16666654
    %v381 = vmul.f32 %v376, %v380
    %v382 = vadd.f32 %v381, 1.0
    %v383 = vmul.f32 %v382, %v367
    %vm384 = vweird.f32 %v86
    %v385 = vadd.s32 %v368, 3
    %v386 = vand.u32 %v385, 3
    %vm387 = vcmp.lt.s32.totalorder %v386, 2
    %vm388 = vcmp.eq.s32.totalorder %v386, 0
    %v389 = vxor.u32 %v383, 2147483648
    %v390 = vsel %vm388, %v375, %v389
    %vm391 = vcmp.eq.s32.totalorder %v386, 2
    %v392 = vxor.u32 %v375, 2147483648
    %v393 = vsel %vm391, %v392, %v383
    %v394 = vsel %vm387, %v390, %v393
    %v395 = vsel %vm384, nan, %v394
    %v396 = vld [vmem:[#allocation7] sm:$0xff]
    %v397 = vld [vmem:[#allocation7 + $0x8] sm:$0xff]
    %v398 = vld [vmem:[#allocation7 + $0x10] sm:$0xff]
    %v399 = vld [vmem:[#allocation7 + $0x18] sm:$0xff]
    %v400 = vld [vmem:[#allocation7 + $0x20] sm:$0xff]
    %v401 = vld [vmem:[#allocation7 + $0x28] sm:$0xff]
    %v402 = vld [vmem:[#allocation7 + $0x30] sm:$0xff]
    %v403 = vld [vmem:[#allocation7 + $0x38] sm:$0xff]
    %v404 = vld [vmem:[#allocation8] sm:$0xff]
    %v405 = vld [vmem:[#allocation8 + $0x8] sm:$0xff]
    %v406 = vld [vmem:[#allocation8 + $0x10] sm:$0xff]
    %v407 = vld [vmem:[#allocation8 + $0x18] sm:$0xff]
    %v408 = vld [vmem:[#allocation8 + $0x20] sm:$0xff]
    %v409 = vld [vmem:[#allocation8 + $0x28] sm:$0xff]
    %v410 = vld [vmem:[#allocation8 + $0x30] sm:$0xff]
    %v411 = vld [vmem:[#allocation8 + $0x38] sm:$0xff]
    %v413 = vperm.slane %v240, 0
    %v414 = vperm.slane %v240, 1
    %v415 = vperm.slane %v240, 2
    %v416 = vperm.slane %v240, 3
    %v421 = vmul.f32 %v413, %v396
    %v422 = vmul.f32 %v414, %v397
    %v423 = vmul.f32 %v415, %v398
    %v424 = vmul.f32 %v416, %v399
    %v425 = vmul.f32 %v413, %v400
    %v426 = vmul.f32 %v414, %v401
    %v427 = vmul.f32 %v415, %v402
    %v428 = vmul.f32 %v416, %v403
    %v430 = vperm.slane %v395, 0
    %v431 = vperm.slane %v395, 1
    %v432 = vperm.slane %v395, 2
    %v433 = vperm.slane %v395, 3
    %v438 = vmul.f32 %v430, %v404
    %v439 = vmul.f32 %v431, %v405
    %v440 = vmul.f32 %v432, %v406
    %v441 = vmul.f32 %v433, %v407
    %v442 = vmul.f32 %v430, %v408
    %v443 = vmul.f32 %v431, %v409
    %v444 = vmul.f32 %v432, %v410
    %v445 = vmul.f32 %v433, %v411
    %v446 = vsub.f32 %v421, %v438
    %v447 = vsub.f32 %v422, %v439
    %v448 = vsub.f32 %v423, %v440
    %v449 = vsub.f32 %v424, %v441
    %v450 = vsub.f32 %v425, %v442
    %v451 = vsub.f32 %v426, %v443
    %v452 = vsub.f32 %v427, %v444
    %v453 = vsub.f32 %v428, %v445
    %454 = vst [vmem:[#allocation10] sm:$0xff] %v446
    %455 = vst [vmem:[#allocation10 + $0x8] sm:$0xff] %v447
    %456 = vst [vmem:[#allocation10 + $0x10] sm:$0xff] %v448
    %457 = vst [vmem:[#allocation10 + $0x18] sm:$0xff] %v449
    %458 = vst [vmem:[#allocation10 + $0x20] sm:$0xff] %v450
    %459 = vst [vmem:[#allocation10 + $0x28] sm:$0xff] %v451
    %460 = vst [vmem:[#allocation10 + $0x30] sm:$0xff] %v452
    %461 = vst [vmem:[#allocation10 + $0x38] sm:$0xff] %v453
    %v462 = vmul.f32 %v430, %v396
    %v463 = vmul.f32 %v431, %v397
    %v464 = vmul.f32 %v432, %v398
    %v465 = vmul.f32 %v433, %v399
    %v466 = vmul.f32 %v430, %v400
    %v467 = vmul.f32 %v431, %v401
    %v468 = vmul.f32 %v432, %v402
    %v469 = vmul.f32 %v433, %v403
    %v470 = vmul.f32 %v413, %v404
    %v471 = vmul.f32 %v414, %v405
    %v472 = vmul.f32 %v415, %v406
    %v473 = vmul.f32 %v416, %v407
    %v474 = vmul.f32 %v413, %v408
    %v475 = vmul.f32 %v414, %v409
    %v476 = vmul.f32 %v415, %v410
    %v477 = vmul.f32 %v416, %v411
    %v478 = vadd.f32 %v462, %v470
    %v479 = vadd.f32 %v463, %v471
    %v480 = vadd.f32 %v464, %v472
    %v481 = vadd.f32 %v465, %v473
    %v482 = vadd.f32 %v466, %v474
    %v483 = vadd.f32 %v467, %v475
    %v484 = vadd.f32 %v468, %v476
    %v485 = vadd.f32 %v469, %v477
    %486 = vst [vmem:[#allocation11] sm:$0xff] %v478
    %487 = vst [vmem:[#allocation11 + $0x8] sm:$0xff] %v479
    %488 = vst [vmem:[#allocation11 + $0x10] sm:$0xff] %v480
    %489 = vst [vmem:[#allocation11 + $0x18] sm:$0xff] %v481
    %490 = vst [vmem:[#allocation11 + $0x20] sm:$0xff] %v482
    %491 = vst [vmem:[#allocation11 + $0x28] sm:$0xff] %v483
    %492 = vst [vmem:[#allocation11 + $0x30] sm:$0xff] %v484
    %493 = vst [vmem:[#allocation11 + $0x38] sm:$0xff] %v485
    // Predicated region
    $region34: #{tpu_custom_call.1} parent=1 // pred_check
      _
    $region35: #{tpu_custom_call.1} parent=1 // pred_check_branch
      %495 = sbr.rel (0) target = $region37
    $region36: #{tpu_custom_call.1} parent=1 // pred_region
      %497 = vsyncadd [#allocation4], 0
      %s498 = sshll.u32 [#allocation10], 4
      %s499 = int_to_ptr.vmem [resolvable:$true] %s498
      %s500 = sshll.u32 %s4, 4
      %s501 = int_to_ptr.hbm [resolvable:$true] %s500
      %506 = dma.vmem_to_hbm [thread:$0]  %s499, 1024, %s501, [#allocation4], 512, 512, 32
    $region37: #{tpu_custom_call.1} parent=1 // pred_fallthru
      _
    // Predicated region
    $region38: #{tpu_custom_call.1} parent=1 // pred_check
      _
    $region39: #{tpu_custom_call.1} parent=1 // pred_check_branch
      %508 = sbr.rel (0) target = $region41
    $region40: #{tpu_custom_call.1} parent=1 // pred_region
      %510 = vsyncadd [#allocation12], 0
      %s511 = sshll.u32 [#allocation11], 4
      %s512 = int_to_ptr.vmem [resolvable:$true] %s511
      %s513 = sshll.u32 %s5, 4
      %s514 = int_to_ptr.hbm [resolvable:$true] %s513
      %519 = dma.vmem_to_hbm [thread:$0]  %s512, 1024, %s514, [#allocation12], 512, 512, 32
    $region41: #{tpu_custom_call.1} parent=1 // pred_fallthru
      _
    // Predicated region
    $region42: #{tpu_custom_call.1} parent=1 // pred_check
      _
    $region43: #{tpu_custom_call.1} parent=1 // pred_check_branch
      %521 = sbr.rel (0) target = $region45
    $region44: #{tpu_custom_call.1} parent=1 // pred_region
      %523 = dma.done [#allocation4], 1024
    $region45: #{tpu_custom_call.1} parent=1 // pred_fallthru
      _
    // Predicated region
    $region46: #{tpu_custom_call.1} parent=1 // pred_check
      _
    $region47: #{tpu_custom_call.1} parent=1 // pred_check_branch
      %525 = sbr.rel (0) target = $region49
    $region48: #{tpu_custom_call.1} parent=1 // pred_region
      %527 = dma.done [#allocation12], 1024
    $region49: #{tpu_custom_call.1} parent=1 // pred_fallthru
      _
    %528 = vsyncpa [#allocation3], 1
    %529 = vsyncpa [#allocation6], 1
    %530 = vsyncpa [#allocation9], 1
    %531 = vsyncpa [#allocation4], 1
    %532 = vsyncpa [#allocation12], 1

</llo_original>
